<compile_context>
chip_gen: v5e
topology: v5e:2x2
jax: 0.10.0
libtpu: 0.0.40
codegen_flags: <defaults>
</compile_context>

<pallas_src>
import functools

import jax
import jax.numpy as jnp
from jax.experimental import pallas as pl
from jax.experimental.pallas import tpu as pltpu

LANE = 128
_VMEM_WORKSET_BUDGET = 32 * 1024 * 1024   # working-set target; fits v7x 64 MiB w/ headroom
_VMEM_LIMIT_BYTES = 48 * 1024 * 1024      # explicit scoped-VMEM limit for Mosaic


def _round_up(x, m):
    return ((x + m - 1) // m) * m


def deepsets_kernel(x_ref, w1_ref, b1_ref, w2_ref, b2_ref,
                    w3_ref, b3_ref, w4_ref, b4_ref, o_ref):
    # x_ref: (TB, N, D_in) f32 block of the batch (unpadded feature dim).
    TB, N, D_in = x_ref.shape

    # Flatten (TB, N) -> rows so phi runs as one fused (TB*N, K) MXU matmul.
    # bf16 cast happens here (in-kernel), not in the wrapper.
    # NOTE: the leading-dim collapse/split reshapes are clean when N % 8 == 0.
    x = x_ref[...].reshape(TB * N, D_in).astype(jnp.bfloat16)

    # ---- phi layer 1: Linear(D_in, 2H) + ReLU ----
    h1 = jnp.dot(x, w1_ref[...], preferred_element_type=jnp.float32)      # (TB*N, H2p) f32
    h1 = jnp.maximum(h1 + b1_ref[...], 0.0)

    # ---- phi layer 2: Linear(2H, H) + ReLU ----
    h2 = jnp.dot(h1.astype(jnp.bfloat16), w2_ref[...],
                 preferred_element_type=jnp.float32)                      # (TB*N, Hp) f32
    h2 = jnp.maximum(h2 + b2_ref[...], 0.0)

    # ---- permutation-invariant aggregation: max over the set dimension ----
    # N is the full (un-tiled) set dim, so no masking is needed for the max.
    agg = jnp.max(h2.reshape(TB, N, -1), axis=1)                          # (TB, Hp) f32

    # ---- rho: Linear(H, H) + ReLU, Linear(H, D_out) ----
    r1 = jnp.dot(agg.astype(jnp.bfloat16), w3_ref[...],
                 preferred_element_type=jnp.float32)                      # (TB, Hp) f32
    r1 = jnp.maximum(r1 + b3_ref[...], 0.0)
    out = jnp.dot(r1.astype(jnp.bfloat16), w4_ref[...],
                  preferred_element_type=jnp.float32) + b4_ref[...]       # (TB, D_out) f32

    # PyTorch module computes torch.sigmoid(output) but discards it -> pre-sigmoid out.
    o_ref[...] = out.astype(o_ref.dtype)


def _pick_block_b(B, N, D_in, H2p, Hp, D_out, fixed_bytes, requested):
    """Batch-tile size from a VMEM working-set budget (N- and generation-safe)."""
    if requested is not None:
        tb = _round_up(max(int(requested), 1), 8)      # sublane-align user value
    else:
        # Per-batch-row VMEM estimate: double-buffered f32 x block, in-kernel bf16 x
        # copy, f32 h1/h2 intermediates, rho-stage rows, double-buffered output block.
        per_row = (2 * N * D_in * 4
                   + N * D_in * 2
                   + N * (H2p + Hp) * 4
                   + (2 * Hp + 3 * D_out) * 4)
        tb = max(_VMEM_WORKSET_BUDGET - fixed_bytes, per_row) // per_row
        tb = max(8, min(int(tb), 1024))                # amortize ~0.35us/step; cap
        tb = (tb // 8) * 8
        # Keep >= 2 grid steps when the batch allows it (feeds v7x's 2nd TensorCore).
        tb = min(tb, _round_up(-(-B // 2), 8))
    # A block covering the whole batch (full leading dim) is always legal.
    return B if tb >= B else tb


@functools.partial(jax.jit, static_argnames=("block_b",))
def deepsets_forward(x, w1, b1, w2, b2, w3, b3, w4, b4, *, block_b=None):
    B, N, D_in = x.shape
    H2 = w1.shape[1]
    H = w2.shape[1]
    D_out = w4.shape[1]

    H2p = _round_up(H2, LANE)
    Hp = _round_up(H, LANE)

    f32, bf16 = jnp.float32, jnp.bfloat16

    # Zero-pad weight output/contraction dims to 128 lanes (exact: padded lanes stay 0
    # through every layer).  x and the output stay UNPADDED -- they carry the HBM traffic.
    w1p = jnp.pad(w1, ((0, 0), (0, H2p - H2))).astype(bf16)              # (D_in, H2p)
    w2p = jnp.pad(w2, ((0, H2p - H2), (0, Hp - H))).astype(bf16)         # (H2p, Hp)
    w3p = jnp.pad(w3, ((0, Hp - H), (0, Hp - H))).astype(bf16)           # (Hp, Hp)
    w4p = jnp.pad(w4, ((0, Hp - H), (0, 0))).astype(bf16)                # (Hp, D_out)
    b1p = jnp.pad(b1.reshape(1, -1), ((0, 0), (0, H2p - H2))).astype(f32)
    b2p = jnp.pad(b2.reshape(1, -1), ((0, 0), (0, Hp - H))).astype(f32)
    b3p = jnp.pad(b3.reshape(1, -1), ((0, 0), (0, Hp - H))).astype(f32)
    b4p = b4.reshape(1, -1).astype(f32)

    fixed_bytes = (sum(w.size * 2 for w in (w1p, w2p, w3p, w4p))
                   + sum(bb.size * 4 for bb in (b1p, b2p, b3p, b4p)))
    TB = _pick_block_b(B, N, D_in, H2p, Hp, D_out, fixed_bytes, block_b)
    grid = (pl.cdiv(B, TB),)

    full = lambda arr: pl.BlockSpec(arr.shape, lambda b: (0,) * arr.ndim)

    flops = 2 * B * N * (D_in * H2 + H2 * H) + 2 * B * (H * H + H * D_out)
    bytes_accessed = (x.size * x.dtype.itemsize
                      + sum(w.size * 2 for w in (w1p, w2p, w3p, w4p))
                      + sum(bb.size * 4 for bb in (b1p, b2p, b3p, b4p))
                      + B * D_out * 4)
    cost = pl.CostEstimate(flops=flops, transcendentals=0,
                           bytes_accessed=bytes_accessed)

    return pl.pallas_call(
        deepsets_kernel,
        out_shape=jax.ShapeDtypeStruct((B, D_out), f32),
        grid_spec=pltpu.PrefetchScalarGridSpec(
            num_scalar_prefetch=0,
            grid=grid,
            in_specs=[
                # x: (TB, N, D_in) -- last two block dims equal the full array dims,
                # so no lane padding / wrapper copy is needed.
                pl.BlockSpec((TB, N, D_in), lambda b: (b, 0, 0)),
                # Weights/biases: constant block index -> Pallas skips re-DMA per step.
                # (A Buffered(1) pipeline_mode would also drop the dead second buffer,
                #  but at these weight sizes (<100 KiB total) the saving is negligible.)
                full(w1p), full(b1p),
                full(w2p), full(b2p),
                full(w3p), full(b3p),
                full(w4p), full(b4p),
            ],
            # Unpadded (TB, D_out) output block: D_out is the full last dim (legal) and
            # the write stream is ~64x smaller than a lane-padded f32 output.
            out_specs=pl.BlockSpec((TB, D_out), lambda b: (b, 0)),
        ),
        compiler_params=pltpu.CompilerParams(
            dimension_semantics=("parallel",),
            vmem_limit_bytes=_VMEM_LIMIT_BYTES),
        cost_estimate=cost,
    )(x, w1p, b1p, w2p, b2p, w3p, b3p, w4p, b4p)


def reference_forward(x, w1, b1, w2, b2, w3, b3, w4, b4):
    # Pure f32 JAX reference (same math as the PyTorch module, pre-sigmoid output).
    h = jnp.maximum(jnp.einsum("bnd,dk->bnk", x, w1) + b1, 0.0)
    h = jnp.maximum(jnp.einsum("bnk,kh->bnh", h, w2) + b2, 0.0)
    agg = jnp.max(h, axis=1)
    r = jnp.maximum(agg @ w3 + b3, 0.0)
    return r @ w4 + b4


def init_params(key, input_dim, hidden_dim, output_dim):
    # PyTorch-Linear-like uniform init U(-1/sqrt(fan_in), 1/sqrt(fan_in)), stored as
    # (in_features, out_features) so the kernel computes x @ W + b.
    dims = [
        (input_dim, 2 * hidden_dim),
        (2 * hidden_dim, hidden_dim),
        (hidden_dim, hidden_dim),
        (hidden_dim, output_dim),
    ]
    params = []
    for fan_in, fan_out in dims:
        key, kw, kb = jax.random.split(key, 3)
        bound = 1.0 / (fan_in ** 0.5)
        w = jax.random.uniform(kw, (fan_in, fan_out), jnp.float32, -bound, bound)
        b = jax.random.uniform(kb, (1, fan_out), jnp.float32, -bound, bound)
        params += [w, b]
    return params


if __name__ == "__main__":
    # batch, set size, input_dim, hidden_dim, output_dim
    B, N, D_in, H, D_out = 2, 8, 4, 32, 2

    key = jax.random.PRNGKey(0)
    key, kx = jax.random.split(key)
    x = jax.random.normal(kx, (B, N, D_in), dtype=jnp.float32)

    params = init_params(key, D_in, H, D_out)

    out = deepsets_forward(x, *params)
    out = jax.block_until_ready(out)

    ref = reference_forward(x, *params)
    assert out.shape == (B, D_out), out.shape
    # Kernel uses bf16 MXU operands with f32 accumulation -> loose tolerance vs f32 ref.
    assert jnp.allclose(out, ref, atol=5e-2, rtol=5e-2), (out, ref)

    print("KERNEL_OK")
</pallas_src>

<mosaic_0001>
module attributes {stable_mosaic.version = 11 : i64} {
  func.func @deepsets_kernel(%arg0: i32, %arg1: memref<2x8x4xf32, #tpu.memory_space<vmem>>, %arg2: memref<4x128xbf16, #tpu.memory_space<vmem>>, %arg3: memref<1x128xf32, #tpu.memory_space<vmem>>, %arg4: memref<128x128xbf16, #tpu.memory_space<vmem>>, %arg5: memref<1x128xf32, #tpu.memory_space<vmem>>, %arg6: memref<128x128xbf16, #tpu.memory_space<vmem>>, %arg7: memref<1x128xf32, #tpu.memory_space<vmem>>, %arg8: memref<128x2xbf16, #tpu.memory_space<vmem>>, %arg9: memref<1x2xf32, #tpu.memory_space<vmem>>, %arg10: memref<2x2xf32, #tpu.memory_space<vmem>>) attributes {dimension_semantics = [#tpu.dimension_semantics<parallel>], iteration_bounds = array<i64: 1>, scalar_prefetch = 0 : i64, scratch_operands = 0 : i64, tpu.core_type = #tpu.core_type<tc>, window_params = [{transform_indices = @transform_0, window_bounds = array<i64: 2, 8, 4>}, {pipeline_mode = #tpu.pipeline_mode<synchronous>, transform_indices = @transform_1, window_bounds = array<i64: 4, 128>}, {pipeline_mode = #tpu.pipeline_mode<synchronous>, transform_indices = @transform_2, window_bounds = array<i64: 1, 128>}, {pipeline_mode = #tpu.pipeline_mode<synchronous>, transform_indices = @transform_3, window_bounds = array<i64: 128, 128>}, {pipeline_mode = #tpu.pipeline_mode<synchronous>, transform_indices = @transform_4, window_bounds = array<i64: 1, 128>}, {pipeline_mode = #tpu.pipeline_mode<synchronous>, transform_indices = @transform_5, window_bounds = array<i64: 128, 128>}, {pipeline_mode = #tpu.pipeline_mode<synchronous>, transform_indices = @transform_6, window_bounds = array<i64: 1, 128>}, {pipeline_mode = #tpu.pipeline_mode<synchronous>, transform_indices = @transform_7, window_bounds = array<i64: 128, 2>}, {pipeline_mode = #tpu.pipeline_mode<synchronous>, transform_indices = @transform_8, window_bounds = array<i64: 1, 2>}, {transform_indices = @transform_9, window_bounds = array<i64: 2, 2>}]} {
    %c0 = arith.constant 0 : index
    %c0_0 = arith.constant 0 : index
    %c0_1 = arith.constant 0 : index
    %0 = vector.load %arg1[%c0, %c0_0, %c0_1] : memref<2x8x4xf32, #tpu.memory_space<vmem>>, vector<2x8x4xf32>
    %1 = vector.shape_cast %0 : vector<2x8x4xf32> to vector<16x4xf32>
    %2 = arith.truncf %1 : vector<16x4xf32> to vector<16x4xbf16>
    %c0_2 = arith.constant 0 : index
    %c0_3 = arith.constant 0 : index
    %3 = vector.load %arg2[%c0_2, %c0_3] : memref<4x128xbf16, #tpu.memory_space<vmem>>, vector<4x128xbf16>
    %cst = arith.constant dense<0.000000e+00> : vector<16x128xf32>
    %4 = tpu.matmul %2, %3, %cst {dimension_numbers = #tpu.dot_dimension_numbers<[1], [0], [0], [1], [0, 0, 1, 1], [], []>} : vector<16x4xbf16>, vector<4x128xbf16>, vector<16x128xf32> -> vector<16x128xf32>
    %c0_4 = arith.constant 0 : index
    %c0_5 = arith.constant 0 : index
    %5 = vector.load %arg3[%c0_4, %c0_5] : memref<1x128xf32, #tpu.memory_space<vmem>>, vector<1x128xf32>
    %6 = vector.broadcast %5 : vector<1x128xf32> to vector<16x128xf32>
    %7 = arith.addf %4, %6 : vector<16x128xf32>
    %cst_6 = arith.constant 0.000000e+00 : f32
    %8 = vector.broadcast %cst_6 : f32 to vector<16x128xf32>
    %9 = arith.maximumf %7, %8 : vector<16x128xf32>
    %10 = arith.truncf %9 : vector<16x128xf32> to vector<16x128xbf16>
    %c0_7 = arith.constant 0 : index
    %c0_8 = arith.constant 0 : index
    %11 = vector.load %arg4[%c0_7, %c0_8] : memref<128x128xbf16, #tpu.memory_space<vmem>>, vector<128x128xbf16>
    %cst_9 = arith.constant dense<0.000000e+00> : vector<16x128xf32>
    %12 = tpu.matmul %10, %11, %cst_9 {dimension_numbers = #tpu.dot_dimension_numbers<[1], [0], [0], [1], [0, 0, 1, 1], [], []>} : vector<16x128xbf16>, vector<128x128xbf16>, vector<16x128xf32> -> vector<16x128xf32>
    %c0_10 = arith.constant 0 : index
    %c0_11 = arith.constant 0 : index
    %13 = vector.load %arg5[%c0_10, %c0_11] : memref<1x128xf32, #tpu.memory_space<vmem>>, vector<1x128xf32>
    %14 = vector.broadcast %13 : vector<1x128xf32> to vector<16x128xf32>
    %15 = arith.addf %12, %14 : vector<16x128xf32>
    %cst_12 = arith.constant 0.000000e+00 : f32
    %16 = vector.broadcast %cst_12 : f32 to vector<16x128xf32>
    %17 = arith.maximumf %15, %16 : vector<16x128xf32>
    %18 = vector.shape_cast %17 : vector<16x128xf32> to vector<2x8x128xf32>
    %cst_13 = arith.constant dense<0xFF800000> : vector<2x128xf32>
    %19 = vector.multi_reduction <maximumf>, %18, %cst_13 [1] : vector<2x8x128xf32> to vector<2x128xf32>
    %20 = arith.truncf %19 : vector<2x128xf32> to vector<2x128xbf16>
    %c0_14 = arith.constant 0 : index
    %c0_15 = arith.constant 0 : index
    %21 = vector.load %arg6[%c0_14, %c0_15] : memref<128x128xbf16, #tpu.memory_space<vmem>>, vector<128x128xbf16>
    %cst_16 = arith.constant dense<0.000000e+00> : vector<2x128xf32>
    %22 = tpu.matmul %20, %21, %cst_16 {dimension_numbers = #tpu.dot_dimension_numbers<[1], [0], [0], [1], [0, 0, 1, 1], [], []>} : vector<2x128xbf16>, vector<128x128xbf16>, vector<2x128xf32> -> vector<2x128xf32>
    %c0_17 = arith.constant 0 : index
    %c0_18 = arith.constant 0 : index
    %23 = vector.load %arg7[%c0_17, %c0_18] : memref<1x128xf32, #tpu.memory_space<vmem>>, vector<1x128xf32>
    %24 = vector.broadcast %23 : vector<1x128xf32> to vector<2x128xf32>
    %25 = arith.addf %22, %24 : vector<2x128xf32>
    %cst_19 = arith.constant 0.000000e+00 : f32
    %26 = vector.broadcast %cst_19 : f32 to vector<2x128xf32>
    %27 = arith.maximumf %25, %26 : vector<2x128xf32>
    %28 = arith.truncf %27 : vector<2x128xf32> to vector<2x128xbf16>
    %c0_20 = arith.constant 0 : index
    %c0_21 = arith.constant 0 : index
    %29 = vector.load %arg8[%c0_20, %c0_21] : memref<128x2xbf16, #tpu.memory_space<vmem>>, vector<128x2xbf16>
    %cst_22 = arith.constant dense<0.000000e+00> : vector<2x2xf32>
    %30 = tpu.matmul %28, %29, %cst_22 {dimension_numbers = #tpu.dot_dimension_numbers<[1], [0], [0], [1], [0, 0, 1, 1], [], []>} : vector<2x128xbf16>, vector<128x2xbf16>, vector<2x2xf32> -> vector<2x2xf32>
    %c0_23 = arith.constant 0 : index
    %c0_24 = arith.constant 0 : index
    %31 = vector.load %arg9[%c0_23, %c0_24] : memref<1x2xf32, #tpu.memory_space<vmem>>, vector<1x2xf32>
    %32 = vector.broadcast %31 : vector<1x2xf32> to vector<2x2xf32>
    %33 = arith.addf %30, %32 : vector<2x2xf32>
    %c0_25 = arith.constant 0 : index
    %c0_26 = arith.constant 0 : index
    %34 = vector.load %arg10[%c0_25, %c0_26] : memref<2x2xf32, #tpu.memory_space<vmem>>, vector<2x2xf32>
    tpu.vector_store %arg10[%c0_25, %c0_26], %33 {strides = array<i32>} : memref<2x2xf32, #tpu.memory_space<vmem>>, vector<2x2xf32>,
    return
  }
  func.func @transform_0(%arg0: i32) -> (i32, i32, i32) {
    %c0_i32 = arith.constant 0 : i32
    %c0_i32_0 = arith.constant 0 : i32
    %c0_i32_1 = arith.constant 0 : i32
    return %arg0, %c0_i32, %c0_i32_0 : i32, i32, i32
  }
  func.func @transform_1(%arg0: i32) -> (i32, i32) {
    %c0_i32 = arith.constant 0 : i32
    %c0_i32_0 = arith.constant 0 : i32
    %c0_i32_1 = arith.constant 0 : i32
    return %c0_i32, %c0_i32_0 : i32, i32
  }
  func.func @transform_2(%arg0: i32) -> (i32, i32) {
    %c0_i32 = arith.constant 0 : i32
    %c0_i32_0 = arith.constant 0 : i32
    %c0_i32_1 = arith.constant 0 : i32
    return %c0_i32, %c0_i32_0 : i32, i32
  }
  func.func @transform_3(%arg0: i32) -> (i32, i32) {
    %c0_i32 = arith.constant 0 : i32
    %c0_i32_0 = arith.constant 0 : i32
    %c0_i32_1 = arith.constant 0 : i32
    return %c0_i32, %c0_i32_0 : i32, i32
  }
  func.func @transform_4(%arg0: i32) -> (i32, i32) {
    %c0_i32 = arith.constant 0 : i32
    %c0_i32_0 = arith.constant 0 : i32
    %c0_i32_1 = arith.constant 0 : i32
    return %c0_i32, %c0_i32_0 : i32, i32
  }
  func.func @transform_5(%arg0: i32) -> (i32, i32) {
    %c0_i32 = arith.constant 0 : i32
    %c0_i32_0 = arith.constant 0 : i32
    %c0_i32_1 = arith.constant 0 : i32
    return %c0_i32, %c0_i32_0 : i32, i32
  }
  func.func @transform_6(%arg0: i32) -> (i32, i32) {
    %c0_i32 = arith.constant 0 : i32
    %c0_i32_0 = arith.constant 0 : i32
    %c0_i32_1 = arith.constant 0 : i32
    return %c0_i32, %c0_i32_0 : i32, i32
  }
  func.func @transform_7(%arg0: i32) -> (i32, i32) {
    %c0_i32 = arith.constant 0 : i32
    %c0_i32_0 = arith.constant 0 : i32
    %c0_i32_1 = arith.constant 0 : i32
    return %c0_i32, %c0_i32_0 : i32, i32
  }
  func.func @transform_8(%arg0: i32) -> (i32, i32) {
    %c0_i32 = arith.constant 0 : i32
    %c0_i32_0 = arith.constant 0 : i32
    %c0_i32_1 = arith.constant 0 : i32
    return %c0_i32, %c0_i32_0 : i32, i32
  }
  func.func @transform_9(%arg0: i32) -> (i32, i32) {
    %c0_i32 = arith.constant 0 : i32
    %c0_i32_0 = arith.constant 0 : i32
    return %arg0, %c0_i32 : i32, i32
  }
}

</mosaic_0001>

<llo_original>
// kernel: deepsets_forward.1
$region0: #{deepsets_forward.1}
  #allocation0 [shape = 'u32[]', space=smem, size = 0x4, offset = 0x4, fixed_abs, tag = 'smem constant byte address 0x4 - core index']
  #allocation1 [shape = 'u32[72,128]{1,0:T(1,128)}', space=vmem, size = 0x9000, scoped, tag = 'internal scratch']
  %s0 = inlined_call_operand.vmem [shape: f32[2,8,4], index: 0, kind: input, shape index: {}]
  %s1 = inlined_call_operand.vmem [shape: bf16[4,128], index: 1, kind: input, shape index: {}]
  %s2 = inlined_call_operand.vmem [shape: f32[1,128], index: 2, kind: input, shape index: {}]
  %s3 = inlined_call_operand.vmem [shape: bf16[128,128], index: 3, kind: input, shape index: {}]
  %s4 = inlined_call_operand.vmem [shape: f32[1,128], index: 4, kind: input, shape index: {}]
  %s5 = inlined_call_operand.vmem [shape: bf16[128,128], index: 5, kind: input, shape index: {}]
  %s6 = inlined_call_operand.vmem [shape: f32[1,128], index: 6, kind: input, shape index: {}]
  %s7 = inlined_call_operand.vmem [shape: bf16[128,2], index: 7, kind: input, shape index: {}]
  %s8 = inlined_call_operand.vmem [shape: f32[1,2], index: 8, kind: input, shape index: {}]
  %s9 = inlined_call_operand.hbm [shape: f32[2,2], index: 9, kind: output, shape index: {}]
  %s10 = sld [smem:[#allocation0]]
  $region46: #{deepsets_forward.1} parent=0
    _
  %s12 = ssub.s32 1, %s10
  %s13 = scalar_select 0, %s12, %s10
  $region1: #{deepsets_forward.1} parent=0
    #allocation2 [shape = 'u8[1024]{0}', space=vmem, size = 0x400, scoped, tag = 'output window, operand 0, single buffered']
    #allocation3 [shape = 's32[1]{0}', space=sflag, size = 0x4, scoped, tag = 'scoped memory for deepsets_forward.1']
    %14 = vsyncpa [#allocation3], 0
    // Predicated region
    $region2: #{deepsets_forward.1} parent=1 // pred_check
      _
    $region3: #{deepsets_forward.1} parent=1 // pred_check_branch
      %16 = sbr.rel (0) target = $region5
    $region4: #{deepsets_forward.1} parent=1 // pred_region
      _
    $region5: #{deepsets_forward.1} parent=1 // pred_fallthru
      _
    // Predicated region
    $region6: #{deepsets_forward.1} parent=1 // pred_check
      _
    $region7: #{deepsets_forward.1} parent=1 // pred_check_branch
      %18 = sbr.rel (0) target = $region9
    $region8: #{deepsets_forward.1} parent=1 // pred_region
      _
    $region9: #{deepsets_forward.1} parent=1 // pred_fallthru
      _
    // Predicated region
    $region10: #{deepsets_forward.1} parent=1 // pred_check
      _
    $region11: #{deepsets_forward.1} parent=1 // pred_check_branch
      %20 = sbr.rel (0) target = $region13
    $region12: #{deepsets_forward.1} parent=1 // pred_region
      _
    $region13: #{deepsets_forward.1} parent=1 // pred_fallthru
      _
    // Predicated region
    $region14: #{deepsets_forward.1} parent=1 // pred_check
      _
    $region15: #{deepsets_forward.1} parent=1 // pred_check_branch
      %22 = sbr.rel (0) target = $region17
    $region16: #{deepsets_forward.1} parent=1 // pred_region
      _
    $region17: #{deepsets_forward.1} parent=1 // pred_fallthru
      _
    // Predicated region
    $region18: #{deepsets_forward.1} parent=1 // pred_check
      _
    $region19: #{deepsets_forward.1} parent=1 // pred_check_branch
      %24 = sbr.rel (0) target = $region21
    $region20: #{deepsets_forward.1} parent=1 // pred_region
      _
    $region21: #{deepsets_forward.1} parent=1 // pred_fallthru
      _
    // Predicated region
    $region22: #{deepsets_forward.1} parent=1 // pred_check
      _
    $region23: #{deepsets_forward.1} parent=1 // pred_check_branch
      %26 = sbr.rel (0) target = $region25
    $region24: #{deepsets_forward.1} parent=1 // pred_region
      _
    $region25: #{deepsets_forward.1} parent=1 // pred_fallthru
      _
    // Predicated region
    $region26: #{deepsets_forward.1} parent=1 // pred_check
      _
    $region27: #{deepsets_forward.1} parent=1 // pred_check_branch
      %28 = sbr.rel (0) target = $region29
    $region28: #{deepsets_forward.1} parent=1 // pred_region
      _
    $region29: #{deepsets_forward.1} parent=1 // pred_fallthru
      _
    // Predicated region
    $region30: #{deepsets_forward.1} parent=1 // pred_check
      _
    $region31: #{deepsets_forward.1} parent=1 // pred_check_branch
      %30 = sbr.rel (0) target = $region33
    $region32: #{deepsets_forward.1} parent=1 // pred_region
      _
    $region33: #{deepsets_forward.1} parent=1 // pred_fallthru
      _
    // Predicated region
    $region34: #{deepsets_forward.1} parent=1 // pred_check
      _
    $region35: #{deepsets_forward.1} parent=1 // pred_check_branch
      %32 = sbr.rel (0) target = $region37
    $region36: #{deepsets_forward.1} parent=1 // pred_region
      _
    $region37: #{deepsets_forward.1} parent=1 // pred_fallthru
      _
    %v34 = vld [vmem:[%s0] sm:$0xff]
    %v35 = vld [vmem:[%s0 + $0x8] sm:$0xff]
    %v36 = vpack.c.bf16 %v35, %v34
    %v37 = vld [vmem:[%s1] sm:$0x3]
    %v38 = vld [vmem:[%s2] sm:$0x1]
    %v40 = vperm.slane %v38, 0
    %vm42 = vcmask 31744
    %v44 = vsel %vm42, %v36, 0
    %vm46 = vcmask 1041408
    %v48 = vsel %vm46, %v37, 0
    %50 = vmatpush.bf16.msra.mxu0 0
    %51 = vmatpush.bf16.msra.mxu0 0
    %52 = vmatpush.bf16.msra.mxu0 0
    %53 = vmatpush.bf16.msra.mxu0 0
    %54 = vmatpush.bf16.msra.mxu0 0
    %55 = vmatpush.bf16.msra.mxu0 0
    %56 = vmatpush.bf16.msra.mxu0 0
    %57 = vmatpush.bf16.msra.mxu0 %v48
    %58 = vmatmul.bf16.gmra.mxu0 %v44
    %v59 = vpop.f32.mrf.mxu0
    %v60 = vadd.f32 %v40, %v59
    %v61 = vpop.f32.mrf.mxu0
    %v62 = vadd.f32 %v40, %v61
    %63 = vdwg.mxu0
    %v64 = vmax.f32 %v60, 0.0
    %v65 = vmax.f32 %v62, 0.0
    %v66 = vpack.c.bf16 %v65, %v64
    %v67 = vld [vmem:[%s3] sm:$0xf]
    %v68 = vld [vmem:[%s3 + $0x4] sm:$0xf]
    %v69 = vld [vmem:[%s3 + $0x8] sm:$0xf]
    %v70 = vld [vmem:[%s3 + $0xc] sm:$0xf]
    %v71 = vld [vmem:[%s3 + $0x10] sm:$0xf]
    %v72 = vld [vmem:[%s3 + $0x14] sm:$0xf]
    %v73 = vld [vmem:[%s3 + $0x18] sm:$0xf]
    %v74 = vld [vmem:[%s3 + $0x1c] sm:$0xf]
    %v75 = vld [vmem:[%s3 + $0x20] sm:$0xf]
    %v76 = vld [vmem:[%s3 + $0x24] sm:$0xf]
    %v77 = vld [vmem:[%s3 + $0x28] sm:$0xf]
    %v78 = vld [vmem:[%s3 + $0x2c] sm:$0xf]
    %v79 = vld [vmem:[%s3 + $0x30] sm:$0xf]
    %v80 = vld [vmem:[%s3 + $0x34] sm:$0xf]
    %v81 = vld [vmem:[%s3 + $0x38] sm:$0xf]
    %v82 = vld [vmem:[%s3 + $0x3c] sm:$0xf]
    %v83 = vld [vmem:[%s4] sm:$0x1]
    %v85 = vperm.slane %v83, 0
    %v103 = vunpack.c.l.b16 %v67
    %v104 = vunpack.c.l.b16 %v68
    %v105 = vunpack.c.l.b16 %v69
    %v106 = vunpack.c.l.b16 %v70
    %v107 = vunpack.c.l.b16 %v71
    %v108 = vunpack.c.l.b16 %v72
    %v109 = vunpack.c.l.b16 %v73
    %v110 = vunpack.c.l.b16 %v74
    %v111 = vunpack.c.l.b16 %v75
    %v112 = vunpack.c.l.b16 %v76
    %v113 = vunpack.c.l.b16 %v77
    %v114 = vunpack.c.l.b16 %v78
    %v115 = vunpack.c.l.b16 %v79
    %v116 = vunpack.c.l.b16 %v80
    %v117 = vunpack.c.l.b16 %v81
    %v118 = vunpack.c.l.b16 %v82
    %v119 = vpack.c.b16 %v104, %v103
    %v120 = vpack.c.b16 %v106, %v105
    %v121 = vpack.c.b16 %v108, %v107
    %v122 = vpack.c.b16 %v110, %v109
    %v123 = vpack.c.b16 %v112, %v111
    %v124 = vpack.c.b16 %v114, %v113
    %v125 = vpack.c.b16 %v116, %v115
    %v126 = vpack.c.b16 %v118, %v117
    %135 = vmatpush.bf16.msra.mxu0 %v126
    %136 = vmatpush.bf16.msra.mxu0 %v125
    %137 = vmatpush.bf16.msra.mxu0 %v124
    %138 = vmatpush.bf16.msra.mxu0 %v123
    %139 = vmatpush.bf16.msra.mxu0 %v122
    %140 = vmatpush.bf16.msra.mxu0 %v121
    %141 = vmatpush.bf16.msra.mxu0 %v120
    %142 = vmatpush.bf16.msra.mxu0 %v119
    %143 = vmatmul.bf16.gmra.mxu0 %v66
    %v144 = vpop.f32.mrf.mxu0
    %v145 = vadd.f32 %v85, %v144
    %v146 = vpop.f32.mrf.mxu0
    %v147 = vadd.f32 %v85, %v146
    %148 = vdwg.mxu0
    %v149 = vmax.f32 %v145, 0.0
    %v150 = vmax.f32 %v147, 0.0
    %v151 = vrot.slane %v149, 4
    %v152 = vmax.f32 %v149, %v151
    %v153 = vrot.slane %v152, 2
    %v154 = vmax.f32 %v152, %v153
    %v155 = vrot.slane %v154, 1
    %v156 = vmax.f32 %v154, %v155
    %v157 = vrot.slane %v150, 4
    %v158 = vmax.f32 %v150, %v157
    %v159 = vrot.slane %v158, 2
    %v160 = vmax.f32 %v158, %v159
    %v161 = vrot.slane %v160, 1
    %v162 = vmax.f32 %v160, %v161
    %v163 = vpack.c.bf16 %v156, %v156
    %v164 = vpack.c.bf16 %v162, %v162
    %v165 = vld [vmem:[%s5] sm:$0xf]
    %v166 = vld [vmem:[%s5 + $0x4] sm:$0xf]
    %v167 = vld [vmem:[%s5 + $0x8] sm:$0xf]
    %v168 = vld [vmem:[%s5 + $0xc] sm:$0xf]
    %v169 = vld [vmem:[%s5 + $0x10] sm:$0xf]
    %v170 = vld [vmem:[%s5 + $0x14] sm:$0xf]
    %v171 = vld [vmem:[%s5 + $0x18] sm:$0xf]
    %v172 = vld [vmem:[%s5 + $0x1c] sm:$0xf]
    %v173 = vld [vmem:[%s5 + $0x20] sm:$0xf]
    %v174 = vld [vmem:[%s5 + $0x24] sm:$0xf]
    %v175 = vld [vmem:[%s5 + $0x28] sm:$0xf]
    %v176 = vld [vmem:[%s5 + $0x2c] sm:$0xf]
    %v177 = vld [vmem:[%s5 + $0x30] sm:$0xf]
    %v178 = vld [vmem:[%s5 + $0x34] sm:$0xf]
    %v179 = vld [vmem:[%s5 + $0x38] sm:$0xf]
    %v180 = vld [vmem:[%s5 + $0x3c] sm:$0xf]
    %v181 = vld [vmem:[%s6] sm:$0x1]
    %v183 = vperm.slane %v181, 0
    %v187 = vunpack.c.l.b16 %v163
    %v188 = vunpack.c.l.b16 %v164
    %vm189 = vcmask 1041409
    %v190 = vsel %vm189, %v188, %v187
    %v191 = vpack.c.b16 %v190, %v190
    %v209 = vunpack.c.l.b16 %v165
    %v210 = vunpack.c.l.b16 %v166
    %v211 = vunpack.c.l.b16 %v167
    %v212 = vunpack.c.l.b16 %v168
    %v213 = vunpack.c.l.b16 %v169
    %v214 = vunpack.c.l.b16 %v170
    %v215 = vunpack.c.l.b16 %v171
    %v216 = vunpack.c.l.b16 %v172
    %v217 = vunpack.c.l.b16 %v173
    %v218 = vunpack.c.l.b16 %v174
    %v219 = vunpack.c.l.b16 %v175
    %v220 = vunpack.c.l.b16 %v176
    %v221 = vunpack.c.l.b16 %v177
    %v222 = vunpack.c.l.b16 %v178
    %v223 = vunpack.c.l.b16 %v179
    %v224 = vunpack.c.l.b16 %v180
    %v225 = vpack.c.b16 %v210, %v209
    %v226 = vpack.c.b16 %v212, %v211
    %v227 = vpack.c.b16 %v214, %v213
    %v228 = vpack.c.b16 %v216, %v215
    %v229 = vpack.c.b16 %v218, %v217
    %v230 = vpack.c.b16 %v220, %v219
    %v231 = vpack.c.b16 %v222, %v221
    %v232 = vpack.c.b16 %v224, %v223
    %241 = vmatpush.bf16.msra.mxu0 %v232
    %242 = vmatpush.bf16.msra.mxu0 %v231
    %243 = vmatpush.bf16.msra.mxu0 %v230
    %244 = vmatpush.bf16.msra.mxu0 %v229
    %245 = vmatpush.bf16.msra.mxu0 %v228
    %246 = vmatpush.bf16.msra.mxu0 %v227
    %247 = vmatpush.bf16.msra.mxu0 %v226
    %248 = vmatpush.bf16.msra.mxu0 %v225
    %249 = vmatmul.bf16.gmra.mxu0 %v191
    %v250 = vpop.f32.mrf.mxu0
    %v251 = vadd.f32 %v183, %v250
    %v252 = vpop.f32.mrf.mxu0
    %253 = vdwg.mxu0
    %v254 = vmax.f32 %v251, 0.0
    %v255 = vpack.c.bf16 %v254, %v254
    %v256 = vld [vmem:[%s7] sm:$0xf]
    %v257 = vld [vmem:[%s7 + $0x4] sm:$0xf]
    %v258 = vld [vmem:[%s7 + $0x8] sm:$0xf]
    %v259 = vld [vmem:[%s7 + $0xc] sm:$0xf]
    %v260 = vld [vmem:[%s7 + $0x10] sm:$0xf]
    %v261 = vld [vmem:[%s7 + $0x14] sm:$0xf]
    %v262 = vld [vmem:[%s7 + $0x18] sm:$0xf]
    %v263 = vld [vmem:[%s7 + $0x1c] sm:$0xf]
    %v264 = vld [vmem:[%s7 + $0x20] sm:$0xf]
    %v265 = vld [vmem:[%s7 + $0x24] sm:$0xf]
    %v266 = vld [vmem:[%s7 + $0x28] sm:$0xf]
    %v267 = vld [vmem:[%s7 + $0x2c] sm:$0xf]
    %v268 = vld [vmem:[%s7 + $0x30] sm:$0xf]
    %v269 = vld [vmem:[%s7 + $0x34] sm:$0xf]
    %v270 = vld [vmem:[%s7 + $0x38] sm:$0xf]
    %v271 = vld [vmem:[%s7 + $0x3c] sm:$0xf]
    %v272 = vld [vmem:[%s8] sm:$0x1]
    %v274 = vperm.slane %v272, 0
    %v292 = vunpack.c.l.b16 %v256
    %v293 = vunpack.c.l.b16 %v257
    %v294 = vunpack.c.l.b16 %v258
    %v295 = vunpack.c.l.b16 %v259
    %v296 = vunpack.c.l.b16 %v260
    %v297 = vunpack.c.l.b16 %v261
    %v298 = vunpack.c.l.b16 %v262
    %v299 = vunpack.c.l.b16 %v263
    %v300 = vunpack.c.l.b16 %v264
    %v301 = vunpack.c.l.b16 %v265
    %v302 = vunpack.c.l.b16 %v266
    %v303 = vunpack.c.l.b16 %v267
    %v304 = vunpack.c.l.b16 %v268
    %v305 = vunpack.c.l.b16 %v269
    %v306 = vunpack.c.l.b16 %v270
    %v307 = vunpack.c.l.b16 %v271
    %v308 = vpack.c.b16 %v293, %v292
    %v309 = vpack.c.b16 %v295, %v294
    %v310 = vpack.c.b16 %v297, %v296
    %v311 = vpack.c.b16 %v299, %v298
    %v312 = vpack.c.b16 %v301, %v300
    %v313 = vpack.c.b16 %v303, %v302
    %v314 = vpack.c.b16 %v305, %v304
    %v315 = vpack.c.b16 %v307, %v306
    %324 = vmatpush.bf16.msra.mxu0 %v315
    %325 = vmatpush.bf16.msra.mxu0 %v314
    %326 = vmatpush.bf16.msra.mxu0 %v313
    %327 = vmatpush.bf16.msra.mxu0 %v312
    %328 = vmatpush.bf16.msra.mxu0 %v311
    %329 = vmatpush.bf16.msra.mxu0 %v310
    %330 = vmatpush.bf16.msra.mxu0 %v309
    %331 = vmatpush.bf16.msra.mxu0 %v308
    %332 = vmatmul.bf16.gmra.mxu0 %v255
    %v333 = vpop.f32.mrf.mxu0
    %v334 = vadd.f32 %v274, %v333
    %v335 = vpop.f32.mrf.mxu0
    %336 = vdwg.mxu0
    %vm337 = vcmask 9216
    %338 = vst.msk [vmem:[#allocation2] sm:$0x3] %vm337, %v334
    // Predicated region
    $region38: #{deepsets_forward.1} parent=1 // pred_check
      _
    $region39: #{deepsets_forward.1} parent=1 // pred_check_branch
      %340 = sbr.rel (0) target = $region41
    $region40: #{deepsets_forward.1} parent=1 // pred_region
      %342 = vsyncadd [#allocation3], 0
      %s344 = sshll.u32 [#allocation2], 4
      %s345 = int_to_ptr.vmem [resolvable:$true] %s344
      %s346 = sshll.u32 %s9, 4
      %s347 = int_to_ptr.hbm [resolvable:$true] %s346
      %349 = dma.vmem_to_hbm [thread:$0]  %s345, 32, %s347, [#allocation3]
    $region41: #{deepsets_forward.1} parent=1 // pred_fallthru
      _
    // Predicated region
    $region42: #{deepsets_forward.1} parent=1 // pred_check
      _
    $region43: #{deepsets_forward.1} parent=1 // pred_check_branch
      %351 = sbr.rel (0) target = $region45
    $region44: #{deepsets_forward.1} parent=1 // pred_region
      %353 = dma.done [#allocation3], 32
    $region45: #{deepsets_forward.1} parent=1 // pred_fallthru
      _
    %354 = vsyncpa [#allocation3], 1

</llo_original>
